<compile_context>
chip_gen: v6e
topology: v6e:2x2x1
jax: 0.10.0
libtpu: 0.0.40
codegen_flags: <defaults>
</compile_context>

<pallas_src>
import functools

import jax
import jax.numpy as jnp
from jax.experimental import pallas as pl
from jax.experimental.pallas import tpu as pltpu


# Below this many input features, layer 1 runs as VPU broadcast MACs instead of an
# MXU matmul (K this small feeds <13% of the systolic rows).
_VPU_LAYER1_MAX_K = 16


def _round_up(n, m):
    return ((n + m - 1) // m) * m


def _value_fn_kernel(x_ref, w1_ref, b1_ref, w2_ref, b2_ref, o_ref, *, use_vpu_l1):
    # x:  (TB, n_states)         -- pipelined batch tile
    # w1: (n_states, width)      -- resident, (in, out) layout
    # b1: (1, width)             -- resident
    # w2: (1, width)             -- resident, layer-2 weight as a lane-dense row
    # b2: (1,) in SMEM           -- scalar bias
    # o:  (TB, 1)
    n_states = x_ref.shape[1]

    if use_vpu_l1:
        # Tiny K: unrolled broadcast multiply-adds on the VPU keep the MXU out of
        # the critical path of this memory-bound kernel.
        x = x_ref[...]                                   # (TB, K)
        acc = x[:, 0:1] * w1_ref[0:1, :] + b1_ref[...]   # (TB, W)
        for k in range(1, n_states):
            acc = acc + x[:, k:k + 1] * w1_ref[k:k + 1, :]
        h = jnp.tanh(acc)
    else:
        h = jnp.tanh(
            jnp.dot(x_ref[...], w1_ref[...], preferred_element_type=jnp.float32)
            + b1_ref[...]
        )

    # Layer 2 (N=1): VPU multiply + lane reduce (XLU) instead of a degenerate
    # (width, 1) MXU matmul. b2 is a scalar read from SMEM.
    v = jnp.sum(h * w2_ref[...], axis=-1, keepdims=True) + b2_ref[0]
    o_ref[...] = v.astype(o_ref.dtype)


def value_function_forward(x, w1_io, b1_row, w2_row, b2, *, block_b=512):
    """Forward pass of ValueFunction:  tanh(x @ W1 + b1) @ W2 + b2.

    x:      (B, n_states)  float32
    w1_io:  (n_states, width)   layer-1 weight, stored (in, out)
    b1_row: (1, width)
    w2_row: (1, width)          layer-2 weight as a row
    b2:     (1,)                layer-2 bias (scalar, placed in SMEM)
    returns (B, 1)
    """
    B, n_states = x.shape
    width = w1_io.shape[1]
    dt_bytes = x.dtype.itemsize

    # Batch tile: multiple of 8 sublanes, capped at block_b (default 512 rows ~
    # the measured sweet spot for pipelined f32 tiles), never larger than needed.
    tb = _round_up(min(block_b, B), 8)
    grid = (pl.cdiv(B, tb),)

    use_vpu_l1 = n_states <= _VPU_LAYER1_MAX_K
    kernel = functools.partial(_value_fn_kernel, use_vpu_l1=use_vpu_l1)

    param_elems = w1_io.size + b1_row.size + w2_row.size + b2.size
    cost = pl.CostEstimate(
        flops=int(2 * B * width * (n_states + 1) + 2 * B * width),
        transcendentals=int(B * width),
        bytes_accessed=int((x.size + B + param_elems) * dt_bytes),
    )

    return pl.pallas_call(
        kernel,
        out_shape=jax.ShapeDtypeStruct((B, 1), x.dtype),
        grid_spec=pltpu.PrefetchScalarGridSpec(
            num_scalar_prefetch=0,
            grid=grid,
            in_specs=[
                # x: pipelined over batch tiles.
                pl.BlockSpec((tb, n_states), lambda i: (i, 0)),
                # Weights/biases: resident in VMEM across the whole grid.
                pl.BlockSpec((n_states, width), lambda i: (0, 0)),
                pl.BlockSpec((1, width), lambda i: (0, 0)),
                pl.BlockSpec((1, width), lambda i: (0, 0)),
                # b2: scalar in SMEM (no padded VMEM tile, no vector DMA).
                pl.BlockSpec(memory_space=pltpu.MemorySpace.SMEM),
            ],
            out_specs=pl.BlockSpec((tb, 1), lambda i: (i, 0)),
        ),
        compiler_params=pltpu.CompilerParams(
            # Batch tiles are independent -> megacore-shardable on v7x,
            # harmless on single-TC v5e/v6e.
            dimension_semantics=("parallel",),
            # Safe on every generation (<= default on v6e/v7x, a raise on v5e);
            # our tiles use only a few hundred KiB anyway.
            vmem_limit_bytes=32 * 1024 * 1024,
        ),
        cost_estimate=cost,
    )(x, w1_io, b1_row, w2_row, b2)


def init_params(key, width, n_states, dtype=jnp.float32):
    """Mirror the PyTorch __init__ (normal(0, 1/sqrt(fan_in)) weights, zero biases),
    but store parameters directly in the kernel's (in, out) layout so no transpose
    is emitted per forward call."""
    k1, k2 = jax.random.split(key)
    w1_io = jax.random.normal(k1, (n_states, width), dtype) * (1.0 / jnp.sqrt(n_states))
    b1_row = jnp.zeros((1, width), dtype)
    w2_row = jax.random.normal(k2, (1, width), dtype) * (1.0 / jnp.sqrt(width))
    b2 = jnp.zeros((1,), dtype)
    return w1_io, b1_row, w2_row, b2


def params_from_torch_layout(w1, b1, w2, b2):
    """One-time conversion from PyTorch nn.Linear layout:
    w1 (width, n_states), b1 (width,), w2 (1, width), b2 (1,)."""
    return w1.T, b1.reshape(1, -1), w2.reshape(1, -1), b2.reshape(-1)


if __name__ == "__main__":
    # Make the pure-JAX reference matmuls (and the in-kernel dot, if used) full f32
    # so the correctness check is tight and precision-mode independent.
    jax.config.update("jax_default_matmul_precision", "highest")

    key = jax.random.PRNGKey(0)
    k_x1, k_p1, k_x2, k_p2 = jax.random.split(key, 4)

    # --- Config 1: tiny state dim (VPU layer-1 path), 4 pipelined batch tiles ---
    batch, n_states, width = 64, 4, 32
    x = jax.random.normal(k_x1, (batch, n_states), jnp.float32)
    w1_io, b1_row, w2_row, b2 = init_params(k_p1, width, n_states)

    out = value_function_forward(x, w1_io, b1_row, w2_row, b2, block_b=16)
    out = jax.block_until_ready(out)

    ref = jnp.tanh(x @ w1_io + b1_row) @ w2_row.T + b2
    assert out.shape == (batch, 1)
    assert jnp.allclose(out, ref, atol=1e-5, rtol=1e-5)

    # --- Config 2: wider state dim (MXU layer-1 path), single resident tile ---
    batch2, n_states2, width2 = 64, 64, 128
    x2 = jax.random.normal(k_x2, (batch2, n_states2), jnp.float32)
    p2 = init_params(k_p2, width2, n_states2)

    out2 = jax.block_until_ready(value_function_forward(x2, *p2))
    ref2 = jnp.tanh(x2 @ p2[0] + p2[1]) @ p2[2].T + p2[3]
    assert out2.shape == (batch2, 1)
    assert jnp.allclose(out2, ref2, atol=1e-4, rtol=1e-4)

    print("KERNEL_OK")
</pallas_src>

<mosaic_0001>
module attributes {stable_mosaic.version = 11 : i64} {
  func.func @_value_fn_kernel(%arg0: i32, %arg1: memref<16x4xf32, #tpu.memory_space<vmem>>, %arg2: memref<4x32xf32, #tpu.memory_space<vmem>>, %arg3: memref<1x32xf32, #tpu.memory_space<vmem>>, %arg4: memref<1x32xf32, #tpu.memory_space<vmem>>, %arg5: memref<1xf32, #tpu.memory_space<smem>>, %arg6: memref<16x1xf32, #tpu.memory_space<vmem>>) attributes {dimension_semantics = [#tpu.dimension_semantics<parallel>], iteration_bounds = array<i64: 4>, scalar_prefetch = 0 : i64, scratch_operands = 0 : i64, tpu.core_type = #tpu.core_type<tc>, window_params = [{transform_indices = @transform_0, window_bounds = array<i64: 16, 4>}, {pipeline_mode = #tpu.pipeline_mode<synchronous>, transform_indices = @transform_1, window_bounds = array<i64: 4, 32>}, {pipeline_mode = #tpu.pipeline_mode<synchronous>, transform_indices = @transform_2, window_bounds = array<i64: 1, 32>}, {pipeline_mode = #tpu.pipeline_mode<synchronous>, transform_indices = @transform_3, window_bounds = array<i64: 1, 32>}, {transform_indices = @transform_4, window_bounds = array<i64: 1>}, {transform_indices = @transform_5, window_bounds = array<i64: 16, 1>}]} {
    %c0 = arith.constant 0 : index
    %c0_0 = arith.constant 0 : index
    %0 = vector.load %arg1[%c0, %c0_0] : memref<16x4xf32, #tpu.memory_space<vmem>>, vector<16x4xf32>
    %1 = vector.extract_strided_slice %0 {offsets = [0, 0], sizes = [16, 1], strides = [1, 1]} : vector<16x4xf32> to vector<16x1xf32>
    %c0_1 = arith.constant 0 : index
    %c0_2 = arith.constant 0 : index
    %2 = vector.load %arg2[%c0_1, %c0_2] : memref<4x32xf32, #tpu.memory_space<vmem>>, vector<1x32xf32>
    %3 = vector.broadcast %1 : vector<16x1xf32> to vector<16x32xf32>
    %4 = vector.broadcast %2 : vector<1x32xf32> to vector<16x32xf32>
    %5 = arith.mulf %3, %4 : vector<16x32xf32>
    %c0_3 = arith.constant 0 : index
    %c0_4 = arith.constant 0 : index
    %6 = vector.load %arg3[%c0_3, %c0_4] : memref<1x32xf32, #tpu.memory_space<vmem>>, vector<1x32xf32>
    %7 = vector.broadcast %6 : vector<1x32xf32> to vector<16x32xf32>
    %8 = arith.addf %5, %7 : vector<16x32xf32>
    %9 = vector.extract_strided_slice %0 {offsets = [0, 1], sizes = [16, 1], strides = [1, 1]} : vector<16x4xf32> to vector<16x1xf32>
    %c1 = arith.constant 1 : index
    %c0_5 = arith.constant 0 : index
    %10 = vector.load %arg2[%c1, %c0_5] : memref<4x32xf32, #tpu.memory_space<vmem>>, vector<1x32xf32>
    %11 = vector.broadcast %9 : vector<16x1xf32> to vector<16x32xf32>
    %12 = vector.broadcast %10 : vector<1x32xf32> to vector<16x32xf32>
    %13 = arith.mulf %11, %12 : vector<16x32xf32>
    %14 = arith.addf %8, %13 : vector<16x32xf32>
    %15 = vector.extract_strided_slice %0 {offsets = [0, 2], sizes = [16, 1], strides = [1, 1]} : vector<16x4xf32> to vector<16x1xf32>
    %c2 = arith.constant 2 : index
    %c0_6 = arith.constant 0 : index
    %16 = vector.load %arg2[%c2, %c0_6] : memref<4x32xf32, #tpu.memory_space<vmem>>, vector<1x32xf32>
    %17 = vector.broadcast %15 : vector<16x1xf32> to vector<16x32xf32>
    %18 = vector.broadcast %16 : vector<1x32xf32> to vector<16x32xf32>
    %19 = arith.mulf %17, %18 : vector<16x32xf32>
    %20 = arith.addf %14, %19 : vector<16x32xf32>
    %21 = vector.extract_strided_slice %0 {offsets = [0, 3], sizes = [16, 1], strides = [1, 1]} : vector<16x4xf32> to vector<16x1xf32>
    %c3 = arith.constant 3 : index
    %c0_7 = arith.constant 0 : index
    %22 = vector.load %arg2[%c3, %c0_7] : memref<4x32xf32, #tpu.memory_space<vmem>>, vector<1x32xf32>
    %23 = vector.broadcast %21 : vector<16x1xf32> to vector<16x32xf32>
    %24 = vector.broadcast %22 : vector<1x32xf32> to vector<16x32xf32>
    %25 = arith.mulf %23, %24 : vector<16x32xf32>
    %26 = arith.addf %20, %25 : vector<16x32xf32>
    %27 = math.tanh %26 : vector<16x32xf32>
    %c0_8 = arith.constant 0 : index
    %c0_9 = arith.constant 0 : index
    %28 = vector.load %arg4[%c0_8, %c0_9] : memref<1x32xf32, #tpu.memory_space<vmem>>, vector<1x32xf32>
    %29 = vector.broadcast %28 : vector<1x32xf32> to vector<16x32xf32>
    %30 = arith.mulf %27, %29 : vector<16x32xf32>
    %cst = arith.constant dense<0.000000e+00> : vector<16xf32>
    %31 = vector.multi_reduction <add>, %30, %cst [1] : vector<16x32xf32> to vector<16xf32>
    %32 = vector.shape_cast %31 : vector<16xf32> to vector<16x1xf32>
    %c0_10 = arith.constant 0 : index
    %33 = memref.load %arg5[%c0_10] : memref<1xf32, #tpu.memory_space<smem>>
    %34 = vector.broadcast %33 : f32 to vector<16x1xf32>
    %35 = arith.addf %32, %34 : vector<16x1xf32>
    %c0_11 = arith.constant 0 : index
    %c0_12 = arith.constant 0 : index
    %36 = vector.load %arg6[%c0_11, %c0_12] : memref<16x1xf32, #tpu.memory_space<vmem>>, vector<16x1xf32>
    tpu.vector_store %arg6[%c0_11, %c0_12], %35 {strides = array<i32>} : memref<16x1xf32, #tpu.memory_space<vmem>>, vector<16x1xf32>,
    return
  }
  func.func @transform_0(%arg0: i32) -> (i32, i32) {
    %c0_i32 = arith.constant 0 : i32
    %c0_i32_0 = arith.constant 0 : i32
    return %arg0, %c0_i32 : i32, i32
  }
  func.func @transform_1(%arg0: i32) -> (i32, i32) {
    %c0_i32 = arith.constant 0 : i32
    %c0_i32_0 = arith.constant 0 : i32
    %c0_i32_1 = arith.constant 0 : i32
    return %c0_i32, %c0_i32_0 : i32, i32
  }
  func.func @transform_2(%arg0: i32) -> (i32, i32) {
    %c0_i32 = arith.constant 0 : i32
    %c0_i32_0 = arith.constant 0 : i32
    %c0_i32_1 = arith.constant 0 : i32
    return %c0_i32, %c0_i32_0 : i32, i32
  }
  func.func @transform_3(%arg0: i32) -> (i32, i32) {
    %c0_i32 = arith.constant 0 : i32
    %c0_i32_0 = arith.constant 0 : i32
    %c0_i32_1 = arith.constant 0 : i32
    return %c0_i32, %c0_i32_0 : i32, i32
  }
  func.func @transform_4(%arg0: i32) -> i32 {
    %c0_i32 = arith.constant 0 : i32
    %c0_i32_0 = arith.constant 0 : i32
    return %c0_i32 : i32
  }
  func.func @transform_5(%arg0: i32) -> (i32, i32) {
    %c0_i32 = arith.constant 0 : i32
    %c0_i32_0 = arith.constant 0 : i32
    return %arg0, %c0_i32 : i32, i32
  }
}

</mosaic_0001>

<llo_original>
// kernel: tpu_custom_call.1
$region0: #{tpu_custom_call.1}
  #allocation0 [shape = 'u32[]', space=smem, size = 0x4, offset = 0x4, fixed_abs, tag = 'smem constant byte address 0x4 - core index']
  #allocation1 [shape = 'u32[144,128]{1,0:T(1,128)}', space=vmem, size = 0x12000, scoped, tag = 'internal scratch']
  #allocation2 [shape = 'f32[1]{0:T(128)S(6)}', space=smem, size = 0x200, scoped, tag = 'scoped memory for tpu_custom_call.1']
  %s0 = inlined_call_operand.vmem [shape: f32[64,4], index: 0, kind: input, shape index: {}]
  %s1 = inlined_call_operand.vmem [shape: f32[4,32], index: 1, kind: input, shape index: {}]
  %s2 = inlined_call_operand.vmem [shape: f32[1,32], index: 2, kind: input, shape index: {}]
  %s3 = inlined_call_operand.vmem [shape: f32[1,32], index: 3, kind: input, shape index: {}]
  %s4 = inlined_call_operand.<no memory space> [shape: f32[1], index: 4, kind: input, shape index: {}]
  %s5 = inlined_call_operand.vmem [shape: f32[64,1], index: 5, kind: output, shape index: {}]
  %s6 = sld [smem:[#allocation0]]
  $region53: #{tpu_custom_call.1} parent=0
    _
  %s8 = ssub.s32 1, %s6
  %s9 = scalar_select 0, %s8, %s6
  %10 = sst [smem:[#allocation2]] %s4
  loop: start=0, step=1, limit=6
  $region2: #{tpu_custom_call.1} parent=0 // loop_pre_header
    _
  $region3: #{tpu_custom_call.1} parent=0 // loop_header
    %s12 = sphi 0, %s16
    %p13 = scmp.ge.s32.totalorder %s12, 6
    %s22 = sphi 0, %s24
    %s25 = sphi 0, %s22
    %s26 = sphi 0, %s25
    %s42 = sphi 0, %s26
    %s46 = sphi 0, %s46
    %s48 = sphi 0, %s46
    %s49 = sphi 0, %s48
    %s63 = sphi 0, %s49
    %s67 = sphi 0, %s67
    %s69 = sphi 0, %s67
    %s70 = sphi 0, %s69
    %s84 = sphi 0, %s70
    %s88 = sphi 0, %s88
    %s90 = sphi 0, %s88
    %s91 = sphi 0, %s90
    %s105 = sphi 0, %s91
    %s109 = sphi 0, %s109
    %s111 = sphi 0, %s109
    %s112 = sphi 0, %s111
    %s126 = sphi 0, %s112
    %s132 = sphi 0, %s134
    %s135 = sphi 0, %s132
    %s136 = sphi 0, %s135
    %s152 = sphi 0, %s136
  $region4: #{tpu_custom_call.1} parent=0 // loop_header_branch
    %15 = sbr.rel (%p13) target = $region8
  $region5: #{tpu_custom_call.1} parent=0 // loop_body
    %s17 = ssub.s32 %s12, 1
    %s18 = ssub.s32 %s12, 2
    %s19 = sadd.s32 %s12, 1
    %s20 = ssub.s32 %s12, %s19
    %p21 = scmp.eq.s32.totalorder %s20, 0
    %s23 = sadd.s32 %s22, 1
    %s24 = scalar_select %p21, %s22, %s23
    %p27 = pneg %p21
    %p28 = scmp.eq.s32.totalorder %s12, 3
    %p29 = por %p27, %p28
    %p30 = scmp.ne.s32.totalorder %s22, %s25
    %p31 = scmp.eq.s32.totalorder %s12, 0
    %p32 = por %p30, %p31
    %p33 = scmp.ne.s32.totalorder %s22, %s25
    %p34 = scmp.eq.s32.totalorder %s17, 3
    %p35 = por %p33, %p34
    %p36 = scmp.ne.s32.totalorder %s25, %s26
    %p37 = scmp.eq.s32.totalorder %s17, 0
    %p38 = por %p36, %p37
    %p39 = scmp.ne.s32.totalorder %s25, %s26
    %p40 = scmp.eq.s32.totalorder %s18, 3
    %p41 = por %p39, %p40
    %p43 = scmp.ne.s32.totalorder %s26, %s42
    %p44 = scmp.eq.s32.totalorder %s18, 0
    %p45 = por %p43, %p44
    %s47 = sadd.s32 %s46, 1
    %p50 = scmp.eq.s32.totalorder %s12, 3
    %p51 = scmp.ne.s32.totalorder %s46, %s48
    %p52 = scmp.eq.s32.totalorder %s12, 0
    %p53 = por %p51, %p52
    %p54 = scmp.ne.s32.totalorder %s46, %s48
    %p55 = scmp.eq.s32.totalorder %s17, 3
    %p56 = por %p54, %p55
    %p57 = scmp.ne.s32.totalorder %s48, %s49
    %p58 = scmp.eq.s32.totalorder %s17, 0
    %p59 = por %p57, %p58
    %p60 = scmp.ne.s32.totalorder %s48, %s49
    %p61 = scmp.eq.s32.totalorder %s18, 3
    %p62 = por %p60, %p61
    %p64 = scmp.ne.s32.totalorder %s49, %s63
    %p65 = scmp.eq.s32.totalorder %s18, 0
    %p66 = por %p64, %p65
    %s68 = sadd.s32 %s67, 1
    %p71 = scmp.eq.s32.totalorder %s12, 3
    %p72 = scmp.ne.s32.totalorder %s67, %s69
    %p73 = scmp.eq.s32.totalorder %s12, 0
    %p74 = por %p72, %p73
    %p75 = scmp.ne.s32.totalorder %s67, %s69
    %p76 = scmp.eq.s32.totalorder %s17, 3
    %p77 = por %p75, %p76
    %p78 = scmp.ne.s32.totalorder %s69, %s70
    %p79 = scmp.eq.s32.totalorder %s17, 0
    %p80 = por %p78, %p79
    %p81 = scmp.ne.s32.totalorder %s69, %s70
    %p82 = scmp.eq.s32.totalorder %s18, 3
    %p83 = por %p81, %p82
    %p85 = scmp.ne.s32.totalorder %s70, %s84
    %p86 = scmp.eq.s32.totalorder %s18, 0
    %p87 = por %p85, %p86
    %s89 = sadd.s32 %s88, 1
    %p92 = scmp.eq.s32.totalorder %s12, 3
    %p93 = scmp.ne.s32.totalorder %s88, %s90
    %p94 = scmp.eq.s32.totalorder %s12, 0
    %p95 = por %p93, %p94
    %p96 = scmp.ne.s32.totalorder %s88, %s90
    %p97 = scmp.eq.s32.totalorder %s17, 3
    %p98 = por %p96, %p97
    %p99 = scmp.ne.s32.totalorder %s90, %s91
    %p100 = scmp.eq.s32.totalorder %s17, 0
    %p101 = por %p99, %p100
    %p102 = scmp.ne.s32.totalorder %s90, %s91
    %p103 = scmp.eq.s32.totalorder %s18, 3
    %p104 = por %p102, %p103
    %p106 = scmp.ne.s32.totalorder %s91, %s105
    %p107 = scmp.eq.s32.totalorder %s18, 0
    %p108 = por %p106, %p107
    %s110 = sadd.s32 %s109, 1
    %p113 = scmp.eq.s32.totalorder %s12, 3
    %p114 = scmp.ne.s32.totalorder %s109, %s111
    %p115 = scmp.eq.s32.totalorder %s12, 0
    %p116 = por %p114, %p115
    %p117 = scmp.ne.s32.totalorder %s109, %s111
    %p118 = scmp.eq.s32.totalorder %s17, 3
    %p119 = por %p117, %p118
    %p120 = scmp.ne.s32.totalorder %s111, %s112
    %p121 = scmp.eq.s32.totalorder %s17, 0
    %p122 = por %p120, %p121
    %p123 = scmp.ne.s32.totalorder %s111, %s112
    %p124 = scmp.eq.s32.totalorder %s18, 3
    %p125 = por %p123, %p124
    %p127 = scmp.ne.s32.totalorder %s112, %s126
    %p128 = scmp.eq.s32.totalorder %s18, 0
    %p129 = por %p127, %p128
    %s130 = ssub.s32 %s12, %s19
    %p131 = scmp.eq.s32.totalorder %s130, 0
    %s133 = sadd.s32 %s132, 1
    %s134 = scalar_select %p131, %s132, %s133
    %p137 = pneg %p131
    %p138 = scmp.eq.s32.totalorder %s12, 3
    %p139 = por %p137, %p138
    %p140 = scmp.ne.s32.totalorder %s132, %s135
    %p141 = scmp.eq.s32.totalorder %s12, 0
    %p142 = por %p140, %p141
    %p143 = scmp.ne.s32.totalorder %s132, %s135
    %p144 = scmp.eq.s32.totalorder %s17, 3
    %p145 = por %p143, %p144
    %p146 = scmp.ne.s32.totalorder %s135, %s136
    %p147 = scmp.eq.s32.totalorder %s17, 0
    %p148 = por %p146, %p147
    %p149 = scmp.ne.s32.totalorder %s135, %s136
    %p150 = scmp.eq.s32.totalorder %s18, 3
    %p151 = por %p149, %p150
    %p153 = scmp.ne.s32.totalorder %s136, %s152
    %p154 = scmp.eq.s32.totalorder %s18, 0
    %p155 = por %p153, %p154
    %p156 = scmp.le.s32.totalorder 1, %s12
    %p157 = scmp.lt.s32.totalorder %s12, 5
    %p158 = pnand %p156, %p157
    %p159 = pneg %p158
    // Predicated region
    $region9: #{tpu_custom_call.1} parent=5 // pred_check
      _
    $region10: #{tpu_custom_call.1} parent=5 // pred_check_branch
      %161 = sbr.rel (%p158) target = $region12
    $region11: #{tpu_custom_call.1} parent=5 // pred_region
      %s162 = ssub.s32 %s12, 1
      // Predicated region
      $region13: #{tpu_custom_call.1} parent=11 // pred_check
        %p163 = pneg %p59
      $region14: #{tpu_custom_call.1} parent=11 // pred_check_branch
        %165 = sbr.rel (%p163) target = $region16
      $region15: #{tpu_custom_call.1} parent=11 // pred_region
        _
      $region16: #{tpu_custom_call.1} parent=11 // pred_fallthru
        _
      // Predicated region
      $region17: #{tpu_custom_call.1} parent=11 // pred_check
        %p166 = pneg %p80
      $region18: #{tpu_custom_call.1} parent=11 // pred_check_branch
        %168 = sbr.rel (%p166) target = $region20
      $region19: #{tpu_custom_call.1} parent=11 // pred_region
        _
      $region20: #{tpu_custom_call.1} parent=11 // pred_fallthru
        _
      // Predicated region
      $region21: #{tpu_custom_call.1} parent=11 // pred_check
        %p169 = pneg %p101
      $region22: #{tpu_custom_call.1} parent=11 // pred_check_branch
        %171 = sbr.rel (%p169) target = $region24
      $region23: #{tpu_custom_call.1} parent=11 // pred_region
        _
      $region24: #{tpu_custom_call.1} parent=11 // pred_fallthru
        _
      // Predicated region
      $region25: #{tpu_custom_call.1} parent=11 // pred_check
        %p172 = pneg %p122
      $region26: #{tpu_custom_call.1} parent=11 // pred_check_branch
        %174 = sbr.rel (%p172) target = $region28
      $region27: #{tpu_custom_call.1} parent=11 // pred_region
        _
      $region28: #{tpu_custom_call.1} parent=11 // pred_fallthru
        _
    $region12: #{tpu_custom_call.1} parent=5 // pred_fallthru
      _
    %p175 = scmp.lt.s32.totalorder %s12, 4
    // Predicated region
    $region29: #{tpu_custom_call.1} parent=5 // pred_check
      %p176 = pneg %p175
    $region30: #{tpu_custom_call.1} parent=5 // pred_check_branch
      %178 = sbr.rel (%p176) target = $region32
    $region31: #{tpu_custom_call.1} parent=5 // pred_region
      // Predicated region
      $region33: #{tpu_custom_call.1} parent=31 // pred_check
        %p179 = pneg %p32
      $region34: #{tpu_custom_call.1} parent=31 // pred_check_branch
        %181 = sbr.rel (%p179) target = $region36
      $region35: #{tpu_custom_call.1} parent=31 // pred_region
        %s182 = smul.u32 2, %s12
        %p183 = scmp.lt.s32.totalorder %s182, 7
        %s184 = scalar_select %p183, %s182, 7
        %s185 = smul.addr %s184, 8
        %s186 = scalar_lea.vmem %s0, %s185
        %s187 = smul.u32 2, %s12
      $region36: #{tpu_custom_call.1} parent=31 // pred_fallthru
        _
    $region32: #{tpu_custom_call.1} parent=5 // pred_fallthru
      _
    %p188 = scmp.le.s32.totalorder 1, %s12
    %p189 = scmp.lt.s32.totalorder %s12, 5
    %p190 = pnand %p188, %p189
    %p191 = pneg %p190
    // Predicated region
    $region37: #{tpu_custom_call.1} parent=5 // pred_check
      _
    $region38: #{tpu_custom_call.1} parent=5 // pred_check_branch
      %193 = sbr.rel (%p190) target = $region40
    $region39: #{tpu_custom_call.1} parent=5 // pred_region
      %s194 = ssub.s32 %s12, 1
      %s195 = smul.u32 2, %s17
      %p196 = scmp.lt.s32.totalorder %s195, 7
      %s197 = scalar_select %p196, %s195, 7
      %s198 = smul.addr %s197, 8
      %s199 = scalar_lea.vmem %s0, %s198
      %p200 = pneg %p38
      %p201 = pneg %p35
      %p202 = pneg %p59
      %p203 = pneg %p56
      %p204 = pneg %p80
      %p205 = pneg %p77
      %p206 = pneg %p101
      %p207 = pneg %p98
      %p208 = pneg %p122
      %p209 = pneg %p119
      %p210 = pneg %p148
      %p211 = pneg %p145
      %s212 = smul.u32 2, %s17
      %p213 = scmp.lt.s32.totalorder %s212, 7
      %s214 = scalar_select %p213, %s212, 7
      %s215 = smul.addr %s214, 8
      %s216 = scalar_lea.vmem %s5, %s215
      %s217 = smul.u32 2, %s17
      %p218 = scmp.lt.s32.totalorder %s217, 7
      %s219 = scalar_select %p218, %s217, 7
      %s220 = smul.addr %s219, 8
      %s221 = scalar_lea.vmem %s0, %s220
      %s222 = smul.u32 2, %s17
      %s223 = smul.u32 2, %s17
      %p224 = scmp.lt.s32.totalorder %s223, 7
      %s225 = scalar_select %p224, %s223, 7
      %s226 = smul.addr %s225, 8
      %s227 = scalar_lea.vmem %s5, %s226
      %s228 = smul.u32 2, %s17
      %v229 = vld [vmem:[%s221] sm:$0xff]
      %v230 = vld [vmem:[%s221 + $0x8] sm:$0xff]
      %v231 = vld [vmem:[%s1] sm:$0x1]
      %233 = vset.pattern.permute.xlu0 0
      %234 = vperm.xlu0 %233, %v229
      %v235 = vpop.permute.xlu0 %234
      %238 = vset.pattern.permute.xlu0 0
      %239 = vperm.xlu0 %238, %v230
      %v240 = vpop.permute.xlu0 %239
      %v242 = vlaneseq
      %v243 = vshrl.u32 %v242, 7
      %v244 = vsub.s32 0, %v243
      %v245 = vrot.slane %v231, %v244
      %v246 = vmul.f32 %v235, %v245
      %v247 = vmul.f32 %v240, %v245
      %v248 = vld [vmem:[%s2] sm:$0x1]
      %v250 = vlaneseq
      %v251 = vshrl.u32 %v250, 7
      %v252 = vsub.s32 0, %v251
      %v253 = vrot.slane %v248, %v252
      %v255 = vadd.f32 %v246, %v253
      %v256 = vadd.f32 %v247, %v253
      %v257 = vld [vmem:[%s1 + $0x1] sm:$0x1]
      %258 = vset.pattern.permute.xlu0 1
      %259 = vperm.xlu0 %258, %v229
      %v260 = vpop.permute.xlu0 %259
      %262 = vset.pattern.permute.xlu0 1
      %263 = vperm.xlu0 %262, %v230
      %v264 = vpop.permute.xlu0 %263
      %v266 = vlaneseq
      %v267 = vshrl.u32 %v266, 7
      %v268 = vsub.s32 0, %v267
      %v269 = vrot.slane %v257, %v268
      %v270 = vmul.f32 %v260, %v269
      %v271 = vmul.f32 %v264, %v269
      %v272 = vadd.f32 %v255, %v270
      %v273 = vadd.f32 %v256, %v271
      %v274 = vld [vmem:[%s1 + $0x2] sm:$0x1]
      %275 = vset.pattern.permute.xlu0 2
      %276 = vperm.xlu0 %275, %v229
      %v277 = vpop.permute.xlu0 %276
      %279 = vset.pattern.permute.xlu0 2
      %280 = vperm.xlu0 %279, %v230
      %v281 = vpop.permute.xlu0 %280
      %v283 = vlaneseq
      %v284 = vshrl.u32 %v283, 7
      %v285 = vsub.s32 0, %v284
      %v286 = vrot.slane %v274, %v285
      %v287 = vmul.f32 %v277, %v286
      %v288 = vmul.f32 %v281, %v286
      %v289 = vadd.f32 %v272, %v287
      %v290 = vadd.f32 %v273, %v288
      %v291 = vld [vmem:[%s1 + $0x3] sm:$0x1]
      %292 = vset.pattern.permute.xlu0 3
      %293 = vperm.xlu0 %292, %v229
      %v294 = vpop.permute.xlu0 %293
      %296 = vset.pattern.permute.xlu0 3
      %297 = vperm.xlu0 %296, %v230
      %v298 = vpop.permute.xlu0 %297
      %v300 = vlaneseq
      %v301 = vshrl.u32 %v300, 7
      %v302 = vsub.s32 0, %v301
      %v303 = vrot.slane %v291, %v302
      %v304 = vmul.f32 %v294, %v303
      %v305 = vmul.f32 %v298, %v303
      %v306 = vadd.f32 %v289, %v304
      %v307 = vadd.f32 %v290, %v305
      %v308 = vtanh.pop %v306
      %v309 = vtanh.pop %v307
      %v310 = vld [vmem:[%s3] sm:$0x1]
      %v312 = vlaneseq
      %v313 = vshrl.u32 %v312, 7
      %v314 = vsub.s32 0, %v313
      %v315 = vrot.slane %v310, %v314
      %v317 = vmul.f32 %v308, %v315
      %v318 = vmul.f32 %v309, %v315
      %vm319 = vcmask 261120
      %v320 = vsel %vm319, %v317, 0.0
      %321 = vadd.xlane.f32.xlu0 %v320
      %v322 = vpop.xlane.xlu0 %321
      %v323 = vsel %vm319, %v318, 0.0
      %324 = vadd.xlane.f32.xlu0 %v323
      %v325 = vpop.xlane.xlu0 %324
      %s326 = sld [smem:[#allocation2]]
      %v327 = vstv %s326
      %v328 = vadd.f32 %v322, %v327
      %v329 = vadd.f32 %v325, %v327
      %vm330 = vcmask 7168
      %331 = vst.msk [vmem:[%s227] sm:$0xff] %vm330, %v328
      %332 = vst.msk [vmem:[%s227 + $0x8] sm:$0xff] %vm330, %v329
      %s333 = smul.u32 2, %s17
      %p334 = scmp.lt.s32.totalorder %s333, 7
      %s335 = scalar_select %p334, %s333, 7
      %s336 = smul.addr %s335, 8
      %s337 = scalar_lea.vmem %s5, %s336
      // Predicated region
      $region41: #{tpu_custom_call.1} parent=39 // pred_check
        %p338 = pneg %p145
      $region42: #{tpu_custom_call.1} parent=39 // pred_check_branch
        %340 = sbr.rel (%p338) target = $region44
      $region43: #{tpu_custom_call.1} parent=39 // pred_region
        %s341 = smul.u32 2, %s17
      $region44: #{tpu_custom_call.1} parent=39 // pred_fallthru
        _
    $region40: #{tpu_custom_call.1} parent=5 // pred_fallthru
      _
    %p342 = scmp.le.s32.totalorder 2, %s12
    // Predicated region
    $region45: #{tpu_custom_call.1} parent=5 // pred_check
      %p343 = pneg %p342
    $region46: #{tpu_custom_call.1} parent=5 // pred_check_branch
      %345 = sbr.rel (%p343) target = $region48
    $region47: #{tpu_custom_call.1} parent=5 // pred_region
      %s346 = ssub.s32 %s12, 2
      // Predicated region
      $region49: #{tpu_custom_call.1} parent=47 // pred_check
        %p347 = pneg %p151
      $region50: #{tpu_custom_call.1} parent=47 // pred_check_branch
        %349 = sbr.rel (%p347) target = $region52
      $region51: #{tpu_custom_call.1} parent=47 // pred_region
        %s350 = smul.u32 2, %s18
        %p351 = scmp.lt.s32.totalorder %s350, 7
        %s352 = scalar_select %p351, %s350, 7
        %s353 = smul.addr %s352, 8
        %s354 = scalar_lea.vmem %s5, %s353
      $region52: #{tpu_custom_call.1} parent=47 // pred_fallthru
        _
    $region48: #{tpu_custom_call.1} parent=5 // pred_fallthru
      _
  $region6: #{tpu_custom_call.1} parent=0 // loop_footer
    %s16 = sadd.s32 1, %s12
  $region7: #{tpu_custom_call.1} parent=0 // loop_footer_branch
    %11 = sbr.rel target = $region3
  $region8: #{tpu_custom_call.1} parent=0 // loop_exit
    _

</llo_original>
